<compile_context>
chip_gen: v7x
topology: tpu7x:2x2x1
jax: 0.10.0
libtpu: 0.0.40
codegen_flags: <defaults>
</compile_context>

<pallas_src>
import jax
import jax.numpy as jnp
from jax.experimental import pallas as pl
from jax.experimental.pallas import tpu as pltpu


def _copy_kernel(x_ref, o_ref):
    # Straight VMEM copy of the current block.
    o_ref[...] = x_ref[...]


_LANE_CANDIDATES = (4096, 2048, 1024, 512, 256, 128)
_TARGET_BLOCK_BYTES = 2 * 1024 * 1024  # ~2 MiB per block -> pipelines well, fits all gens


def _sublane_multiple(dtype) -> int:
    # 8 rows for 4-byte dtypes, 16 for 2-byte, 32 for 1-byte (packed sublanes).
    itemsize = jnp.dtype(dtype).itemsize
    return max(8, 32 // max(itemsize, 1))


def _pallas_identity(x: jax.Array) -> jax.Array:
    """Identity materialization through a tiled, lane-dense Pallas copy."""
    if x.size == 0:
        return x

    orig_shape = x.shape
    dtype = x.dtype
    n = x.size
    itemsize = jnp.dtype(dtype).itemsize

    # Pick the widest lane count (multiple of 128) that divides the flat size.
    lane = None
    for cand in _LANE_CANDIDATES:
        if n % cand == 0:
            lane = cand
            break

    if lane is None:
        # Ragged / tiny / scalar tensors: single full-extent block
        # (full-array blocks are exempt from the (8,128) divisibility rule).
        lane_small = orig_shape[-1] if x.ndim >= 1 else 1
        rows_small = n // lane_small
        x2d = x.reshape(rows_small, lane_small)
        out = pl.pallas_call(
            _copy_kernel,
            out_shape=jax.ShapeDtypeStruct((rows_small, lane_small), dtype),
            grid=(1,),
            in_specs=[pl.BlockSpec((rows_small, lane_small), lambda i: (0, 0))],
            out_specs=pl.BlockSpec((rows_small, lane_small), lambda i: (0, 0)),
        )(x2d)
        return out.reshape(orig_shape)

    rows = n // lane
    sub = _sublane_multiple(dtype)

    # Row tile sized to ~2 MiB, rounded down to the dtype sublane multiple.
    tr = max(sub, (_TARGET_BLOCK_BYTES // (lane * itemsize)) // sub * sub)
    if tr >= rows:
        tr = rows  # full extent along rows -> exempt from divisibility rule
    grid = (pl.cdiv(rows, tr),)  # partial final block: stores auto-masked

    x2d = x.reshape(rows, lane)
    out = pl.pallas_call(
        _copy_kernel,
        out_shape=jax.ShapeDtypeStruct((rows, lane), dtype),
        grid=grid,
        in_specs=[pl.BlockSpec((tr, lane), lambda i: (i, 0))],
        out_specs=pl.BlockSpec((tr, lane), lambda i: (i, 0)),
        compiler_params=pltpu.CompilerParams(
            dimension_semantics=("parallel",),          # shard rows across TCs (v7x)
            vmem_limit_bytes=64 * 1024 * 1024,          # explicit, well under all gens
        ),
    )(x2d)
    return out.reshape(orig_shape)


class PickDictKey:
    """Demo inner module: selects one tensor out of the input dict.

    With materialize=True the selected tensor flows through the Pallas copy
    kernel; with materialize=False it is returned directly (zero HBM traffic),
    which is the optimal path for a pure pass-through.
    """

    def __init__(self, key, materialize: bool = True):
        self.key = key
        self.materialize = materialize

    def forward(self, input_dict):
        selected = input_dict[self.key]
        if not self.materialize:
            return selected
        return _pallas_identity(selected)

    __call__ = forward


class ArgsToDict:
    """JAX equivalent of the PyTorch ArgsToDict wrapper.

    forward(*args) packs the positional args into a dict keyed by `keys` and
    forwards it to the wrapped module.  (The torch reference forgets to store
    `keys` in __init__; we store it, matching the obvious intent of forward.)
    """

    def __init__(self, module, keys):
        self.module = module
        self.keys = tuple(keys)

    def forward(self, *args):
        return self.module.forward(dict(zip(self.keys, args)))

    __call__ = forward


if __name__ == "__main__":
    key = jax.random.PRNGKey(0)
    k1, k2 = jax.random.split(key)

    # Small deterministic example inputs consistent with the module:
    # two positional tensors packed under keys ("x", "y").
    x = jax.random.normal(k1, (2, 4, 16, 16), dtype=jnp.float32)  # NCHW
    y = jax.random.normal(k2, (2, 8), dtype=jnp.float32)

    inner = PickDictKey("x", materialize=True)      # exercises the Pallas kernel
    module = ArgsToDict(inner, keys=("x", "y"))

    out = module(x, y)
    out = jax.block_until_ready(out)

    # Verify exact pass-through semantics (shape, dtype, values).
    assert out.shape == x.shape, (out.shape, x.shape)
    assert out.dtype == x.dtype, (out.dtype, x.dtype)
    assert bool(jnp.all(out == x)), "identity kernel mismatch"

    # Also exercise the ragged fallback path (lane width not a multiple of 128).
    inner_y = PickDictKey("y", materialize=True)
    out_y = jax.block_until_ready(ArgsToDict(inner_y, keys=("x", "y"))(x, y))
    assert bool(jnp.all(out_y == y)), "ragged-path identity mismatch"

    print("KERNEL_OK")
</pallas_src>

<mosaic_0001>
module attributes {stable_mosaic.version = 11 : i64} {
  func.func @_copy_kernel(%arg0: i32, %arg1: memref<1x2048xf32, #tpu.memory_space<vmem>>, %arg2: memref<1x2048xf32, #tpu.memory_space<vmem>>) attributes {dimension_semantics = [#tpu.dimension_semantics<parallel>], iteration_bounds = array<i64: 1>, scalar_prefetch = 0 : i64, scratch_operands = 0 : i64, tpu.core_type = #tpu.core_type<tc>, window_params = [{transform_indices = @transform_0, window_bounds = array<i64: 1, 2048>}, {transform_indices = @transform_1, window_bounds = array<i64: 1, 2048>}]} {
    %c0 = arith.constant 0 : index
    %c0_0 = arith.constant 0 : index
    %0 = vector.load %arg1[%c0, %c0_0] : memref<1x2048xf32, #tpu.memory_space<vmem>>, vector<1x2048xf32>
    %c0_1 = arith.constant 0 : index
    %c0_2 = arith.constant 0 : index
    %1 = vector.load %arg2[%c0_1, %c0_2] : memref<1x2048xf32, #tpu.memory_space<vmem>>, vector<1x2048xf32>
    tpu.vector_store %arg2[%c0_1, %c0_2], %0 {strides = array<i32>} : memref<1x2048xf32, #tpu.memory_space<vmem>>, vector<1x2048xf32>,
    return
  }
  func.func @transform_0(%arg0: i32) -> (i32, i32) {
    %c0_i32 = arith.constant 0 : i32
    %c0_i32_0 = arith.constant 0 : i32
    return %arg0, %c0_i32 : i32, i32
  }
  func.func @transform_1(%arg0: i32) -> (i32, i32) {
    %c0_i32 = arith.constant 0 : i32
    %c0_i32_0 = arith.constant 0 : i32
    return %arg0, %c0_i32 : i32, i32
  }
}

</mosaic_0001>

<llo_original>
// kernel: tpu_custom_call.1
$region0: #{tpu_custom_call.1}
  #allocation0 [shape = 'u32[]', space=smem, size = 0x4, offset = 0x4, fixed_abs, tag = 'smem constant byte address 0x4 - core index']
  #allocation1 [shape = 'u32[144,128]{1,0:T(1,128)}', space=vmem, size = 0x12000, scoped, tag = 'internal scratch']
  %s0 = inlined_call_operand.hbm [shape: f32[1,2048], index: 0, kind: input, shape index: {}]
  %s1 = inlined_call_operand.hbm [shape: f32[1,2048], index: 1, kind: output, shape index: {}]
  %s2 = sld [smem:[#allocation0]]
  $region18: #{tpu_custom_call.1} parent=0
    _
  %s4 = ssub.s32 1, %s2
  %s5 = scalar_select 0, %s4, %s2
  $region1: #{tpu_custom_call.1} parent=0
    #allocation2 [shape = 'u8[8192]{0}', space=vmem, size = 0x2000, scoped, tag = 'input window, operand 0, single buffered']
    #allocation3 [shape = 's32[1]{0}', space=sflag, size = 0x4, scoped, tag = 'scoped memory for tpu_custom_call.1']
    #allocation4 [shape = 's32[1]{0}', space=sflag, size = 0x4, scoped, tag = 'scoped memory for tpu_custom_call.1']
    #allocation5 [shape = 'u8[8192]{0}', space=vmem, size = 0x2000, scoped, tag = 'output window, operand 0, single buffered']
    %6 = vsyncpa [#allocation3], 0
    %7 = vsyncpa [#allocation4], 0
    // Predicated region
    $region2: #{tpu_custom_call.1} parent=1 // pred_check
      _
    $region3: #{tpu_custom_call.1} parent=1 // pred_check_branch
      %9 = sbr.rel (0) target = $region5
    $region4: #{tpu_custom_call.1} parent=1 // pred_region
      %s11 = ssub.s32 256, 256
      %12 = vsyncadd [#allocation3], %s11
      %s14 = sshll.u32 [#allocation2], 4
      %s15 = int_to_ptr.vmem [resolvable:$true] %s14
      %17 = dma.hbm_to_vmem [thread:$0]  %s0, 256, %s15, [#allocation3]
    $region5: #{tpu_custom_call.1} parent=1 // pred_fallthru
      _
    // Predicated region
    $region6: #{tpu_custom_call.1} parent=1 // pred_check
      _
    $region7: #{tpu_custom_call.1} parent=1 // pred_check_branch
      %19 = sbr.rel (0) target = $region9
    $region8: #{tpu_custom_call.1} parent=1 // pred_region
      %20 = dma.done [#allocation3], 256
    $region9: #{tpu_custom_call.1} parent=1 // pred_fallthru
      _
    %v21 = vld [vmem:[#allocation2] sm:$0xff]
    %v22 = vld [vmem:[#allocation2 + $0x8] sm:$0xff]
    %23 = vst [vmem:[#allocation5] sm:$0xff] %v21
    %24 = vst [vmem:[#allocation5 + $0x8] sm:$0xff] %v22
    // Predicated region
    $region10: #{tpu_custom_call.1} parent=1 // pred_check
      _
    $region11: #{tpu_custom_call.1} parent=1 // pred_check_branch
      %26 = sbr.rel (0) target = $region13
    $region12: #{tpu_custom_call.1} parent=1 // pred_region
      %s28 = ssub.s32 256, 256
      %29 = vsyncadd [#allocation4], %s28
      %s31 = sshll.u32 [#allocation5], 4
      %s32 = int_to_ptr.vmem [resolvable:$true] %s31
      %34 = dma.vmem_to_hbm [thread:$0]  %s32, 256, %s1, [#allocation4]
    $region13: #{tpu_custom_call.1} parent=1 // pred_fallthru
      _
    // Predicated region
    $region14: #{tpu_custom_call.1} parent=1 // pred_check
      _
    $region15: #{tpu_custom_call.1} parent=1 // pred_check_branch
      %36 = sbr.rel (0) target = $region17
    $region16: #{tpu_custom_call.1} parent=1 // pred_region
      %37 = dma.done [#allocation4], 256
    $region17: #{tpu_custom_call.1} parent=1 // pred_fallthru
      _
    %38 = vsyncpa [#allocation3], 1
    %39 = vsyncpa [#allocation4], 1

</llo_original>
